<compile_context>
chip_gen: v7x
topology: tpu7x:2x2x1
jax: 0.10.0
libtpu: 0.0.40
codegen_flags: <defaults>
</compile_context>

<pallas_src>
import math

import jax
import jax.numpy as jnp
from jax.experimental import pallas as pl
from jax.experimental.pallas import tpu as pltpu


def _lora_kernel(alpha_ref, x_ref, a_ref, b_ref, o_ref):
    # alpha_ref: (1, 1) SMEM scalar
    # x_ref: (TILE_M, in_dim), a_ref: (in_dim, rank), b_ref: (rank, TILE_N)
    alpha = alpha_ref[0, 0]
    # First matmul, f32 accumulate on the MXU.
    xa = jnp.dot(x_ref[...], a_ref[...], preferred_element_type=jnp.float32)
    # Scale the rank-sized intermediate (VPU cost ~ rank, not out_dim), then
    # cast back to the input dtype so the second matmul stays on the fast path.
    xa = (alpha * xa).astype(x_ref.dtype)
    out = jnp.dot(xa, b_ref[...], preferred_element_type=jnp.float32)
    o_ref[...] = out.astype(o_ref.dtype)


def _round_up(x, m):
    return (x + m - 1) // m * m


def lora_forward(x, A, B, alpha,
                 tile_m_max=512, tile_n_max=1024,
                 x_tile_budget_bytes=12 * 1024 * 1024):
    """alpha * (x @ A @ B) with a row/out_dim-tiled Pallas TPU kernel."""
    orig_shape = x.shape
    in_dim = orig_shape[-1]
    rank = A.shape[1]
    out_dim = B.shape[1]

    x2d = x.reshape(-1, in_dim)
    rows = x2d.shape[0]
    itemsize = x2d.dtype.itemsize

    # ---- tile selection --------------------------------------------------
    # Row tile: keep the double-buffered x tile inside a fixed VMEM budget so
    # the config also fits v7x (64 MiB VMEM) without retuning.
    tile_m = min(tile_m_max, x_tile_budget_bytes // max(1, 2 * in_dim * itemsize))
    tile_m = max(8, (tile_m // 8) * 8)
    if rows <= tile_m:
        tile_m = rows  # single full-extent block (exempt from the (8,128) rule)
    # Out-dim tile: lane-dense multiple of 128 unless out_dim is already small.
    tile_n = out_dim if out_dim <= tile_n_max else tile_n_max

    # ---- pad to whole tiles (no-op for already-aligned shapes) ------------
    rows_p = _round_up(rows, tile_m)
    out_p = _round_up(out_dim, tile_n)
    if rows_p != rows:
        x2d = jnp.pad(x2d, ((0, rows_p - rows), (0, 0)))
    Bp = B if out_p == out_dim else jnp.pad(B, ((0, 0), (0, out_p - out_dim)))

    grid = (rows_p // tile_m, out_p // tile_n)
    alpha_arr = jnp.full((1, 1), alpha, dtype=jnp.float32)

    # ---- scheduler hints ---------------------------------------------------
    flops = 2 * rows * rank * (in_dim + out_dim)
    bytes_accessed = ((x2d.size + rows_p * out_p) * itemsize
                      + (A.size + Bp.size) * A.dtype.itemsize)
    cost = pl.CostEstimate(flops=flops, transcendentals=0,
                           bytes_accessed=bytes_accessed)

    # Scoped VMEM: double-buffered x/out tiles + A + B tile + f32 intermediate,
    # with headroom, clamped to stay under v7x's 64 MiB physical VMEM.
    vmem_need = (2 * tile_m * in_dim * itemsize
                 + 2 * tile_m * tile_n * itemsize
                 + 2 * in_dim * rank * A.dtype.itemsize
                 + 2 * rank * tile_n * B.dtype.itemsize
                 + tile_m * max(rank, 128) * 4)
    vmem_limit = int(min(max(int(vmem_need * 1.5), 32 * 1024 * 1024),
                         48 * 1024 * 1024))

    out2d = pl.pallas_call(
        _lora_kernel,
        out_shape=jax.ShapeDtypeStruct((rows_p, out_p), x.dtype),
        grid=grid,
        in_specs=[
            pl.BlockSpec(memory_space=pltpu.MemorySpace.SMEM),    # alpha scalar
            pl.BlockSpec((tile_m, in_dim), lambda i, j: (i, 0)),  # x row tile
            pl.BlockSpec((in_dim, rank), lambda i, j: (0, 0)),    # A resident
            pl.BlockSpec((rank, tile_n), lambda i, j: (0, j)),    # B col tile
        ],
        out_specs=pl.BlockSpec((tile_m, tile_n), lambda i, j: (i, j)),
        compiler_params=pltpu.CompilerParams(
            dimension_semantics=("parallel", "parallel"),
            vmem_limit_bytes=vmem_limit,
        ),
        cost_estimate=cost,
    )(alpha_arr, x2d, A, Bp)

    out2d = out2d[:rows, :out_dim]
    return out2d.reshape(*orig_shape[:-1], out_dim)


def init_lora_params(key, in_dim, rank, out_dim, dtype=jnp.float32):
    """Match torch.nn.init for LoRALayer:
    A: kaiming_uniform_(a=sqrt(5)) on shape (in_dim, rank)
       -> fan_in = rank, gain = sqrt(2/(1+5)) = sqrt(1/3),
          bound = gain * sqrt(3/fan_in) = 1/sqrt(rank)
    B: zeros of shape (rank, out_dim)
    """
    bound = 1.0 / math.sqrt(rank)
    A = jax.random.uniform(key, (in_dim, rank), dtype=dtype,
                           minval=-bound, maxval=bound)
    B = jnp.zeros((rank, out_dim), dtype=dtype)
    return A, B


if __name__ == "__main__":
    batch, seq, in_dim = 2, 8, 32
    rank, out_dim = 4, 32
    alpha = 2.0

    key = jax.random.PRNGKey(0)
    kx, ka = jax.random.split(key)

    x = jax.random.normal(kx, (batch, seq, in_dim), dtype=jnp.float32)
    A, B = init_lora_params(ka, in_dim, rank, out_dim)

    out = lora_forward(x, A, B, alpha)
    out = jax.block_until_ready(out)

    # Reference in plain JAX (B is zero-initialized per the module, so the
    # output is exactly zero — still checked for shape/dtype/values).
    ref = alpha * (x @ A @ B)
    assert out.shape == (batch, seq, out_dim)
    assert out.dtype == x.dtype
    assert jnp.allclose(out, ref, atol=1e-5, rtol=1e-5)

    # Sanity-check with a nonzero B so the kernel math is actually exercised.
    B_nz = jax.random.normal(jax.random.PRNGKey(1), (rank, out_dim),
                             dtype=jnp.float32) * 0.1
    out_nz = jax.block_until_ready(lora_forward(x, A, B_nz, alpha))
    ref_nz = alpha * (x @ A @ B_nz)
    assert jnp.allclose(out_nz, ref_nz, atol=1e-4, rtol=1e-4)

    # Also exercise the multi-tile path (rows > tile_m, out_dim > tile_n) at a
    # small scale by forcing tiny tiles, to validate tiling + padding logic.
    x_big = jax.random.normal(jax.random.PRNGKey(2), (4, 24, in_dim),
                              dtype=jnp.float32)
    out_big = jax.block_until_ready(
        lora_forward(x_big, A, B_nz, alpha, tile_m_max=32, tile_n_max=16))
    ref_big = alpha * (x_big @ A @ B_nz)
    assert jnp.allclose(out_big, ref_big, atol=1e-4, rtol=1e-4)

    print("KERNEL_OK")
</pallas_src>

<mosaic_0001>
module attributes {stable_mosaic.version = 11 : i64} {
  func.func @_lora_kernel(%arg0: i32, %arg1: i32, %arg2: memref<1x1xf32, #tpu.memory_space<smem>>, %arg3: memref<16x32xf32, #tpu.memory_space<vmem>>, %arg4: memref<32x4xf32, #tpu.memory_space<vmem>>, %arg5: memref<4x32xf32, #tpu.memory_space<vmem>>, %arg6: memref<16x32xf32, #tpu.memory_space<vmem>>) attributes {dimension_semantics = [#tpu.dimension_semantics<parallel>, #tpu.dimension_semantics<parallel>], iteration_bounds = array<i64: 1, 1>, scalar_prefetch = 0 : i64, scratch_operands = 0 : i64, tpu.core_type = #tpu.core_type<tc>, window_params = [{transform_indices = @transform_0, window_bounds = array<i64: 1, 1>}, {transform_indices = @transform_1, window_bounds = array<i64: 16, 32>}, {pipeline_mode = #tpu.pipeline_mode<synchronous>, transform_indices = @transform_2, window_bounds = array<i64: 32, 4>}, {transform_indices = @transform_3, window_bounds = array<i64: 4, 32>}, {transform_indices = @transform_4, window_bounds = array<i64: 16, 32>}]} {
    %c0 = arith.constant 0 : index
    %c0_0 = arith.constant 0 : index
    %0 = memref.load %arg2[%c0, %c0_0] : memref<1x1xf32, #tpu.memory_space<smem>>
    %c0_1 = arith.constant 0 : index
    %c0_2 = arith.constant 0 : index
    %1 = vector.load %arg3[%c0_1, %c0_2] : memref<16x32xf32, #tpu.memory_space<vmem>>, vector<16x32xf32>
    %c0_3 = arith.constant 0 : index
    %c0_4 = arith.constant 0 : index
    %2 = vector.load %arg4[%c0_3, %c0_4] : memref<32x4xf32, #tpu.memory_space<vmem>>, vector<32x4xf32>
    %cst = arith.constant dense<0.000000e+00> : vector<16x4xf32>
    %3 = tpu.matmul %1, %2, %cst {dimension_numbers = #tpu.dot_dimension_numbers<[1], [0], [0], [1], [0, 0, 1, 1], [], []>} : vector<16x32xf32>, vector<32x4xf32>, vector<16x4xf32> -> vector<16x4xf32>
    %4 = vector.broadcast %0 : f32 to vector<16x4xf32>
    %5 = arith.mulf %4, %3 : vector<16x4xf32>
    %c0_5 = arith.constant 0 : index
    %c0_6 = arith.constant 0 : index
    %6 = vector.load %arg5[%c0_5, %c0_6] : memref<4x32xf32, #tpu.memory_space<vmem>>, vector<4x32xf32>
    %cst_7 = arith.constant dense<0.000000e+00> : vector<16x32xf32>
    %7 = tpu.matmul %5, %6, %cst_7 {dimension_numbers = #tpu.dot_dimension_numbers<[1], [0], [0], [1], [0, 0, 1, 1], [], []>} : vector<16x4xf32>, vector<4x32xf32>, vector<16x32xf32> -> vector<16x32xf32>
    %c0_8 = arith.constant 0 : index
    %c0_9 = arith.constant 0 : index
    %8 = vector.load %arg6[%c0_8, %c0_9] : memref<16x32xf32, #tpu.memory_space<vmem>>, vector<16x32xf32>
    tpu.vector_store %arg6[%c0_8, %c0_9], %7 {strides = array<i32>} : memref<16x32xf32, #tpu.memory_space<vmem>>, vector<16x32xf32>,
    return
  }
  func.func @transform_0(%arg0: i32, %arg1: i32) -> (i32, i32) {
    %c0_i32 = arith.constant 0 : i32
    %c0_i32_0 = arith.constant 0 : i32
    %c0_i32_1 = arith.constant 0 : i32
    return %c0_i32, %c0_i32_0 : i32, i32
  }
  func.func @transform_1(%arg0: i32, %arg1: i32) -> (i32, i32) {
    %c0_i32 = arith.constant 0 : i32
    %c0_i32_0 = arith.constant 0 : i32
    return %arg0, %c0_i32 : i32, i32
  }
  func.func @transform_2(%arg0: i32, %arg1: i32) -> (i32, i32) {
    %c0_i32 = arith.constant 0 : i32
    %c0_i32_0 = arith.constant 0 : i32
    %c0_i32_1 = arith.constant 0 : i32
    return %c0_i32, %c0_i32_0 : i32, i32
  }
  func.func @transform_3(%arg0: i32, %arg1: i32) -> (i32, i32) {
    %c0_i32 = arith.constant 0 : i32
    %c0_i32_0 = arith.constant 0 : i32
    return %c0_i32, %arg1 : i32, i32
  }
  func.func @transform_4(%arg0: i32, %arg1: i32) -> (i32, i32) {
    %c0_i32 = arith.constant 0 : i32
    return %arg0, %arg1 : i32, i32
  }
}

</mosaic_0001>

<llo_original>
// kernel: tpu_custom_call.1
$region0: #{tpu_custom_call.1}
  #allocation0 [shape = 'u32[]', space=smem, size = 0x4, offset = 0x4, fixed_abs, tag = 'smem constant byte address 0x4 - core index']
  #allocation1 [shape = 'u32[144,128]{1,0:T(1,128)}', space=vmem, size = 0x12000, scoped, tag = 'internal scratch']
  #allocation2 [shape = 'f32[1,1]{1,0:T(1,128)S(6)}', space=smem, size = 0x200, scoped, tag = 'scoped memory for tpu_custom_call.1']
  %s0 = inlined_call_operand.<no memory space> [shape: f32[1,1], index: 0, kind: input, shape index: {}]
  %s1 = inlined_call_operand.vmem [shape: f32[16,32], index: 1, kind: input, shape index: {}]
  %s2 = inlined_call_operand.vmem [shape: f32[32,4], index: 2, kind: input, shape index: {}]
  %s3 = inlined_call_operand.vmem [shape: f32[4,32], index: 3, kind: input, shape index: {}]
  %s4 = inlined_call_operand.hbm [shape: f32[16,32], index: 4, kind: output, shape index: {}]
  %s5 = sld [smem:[#allocation0]]
  $region26: #{tpu_custom_call.1} parent=0
    _
  %s7 = ssub.s32 1, %s5
  %s8 = scalar_select 0, %s7, %s5
  %9 = sst [smem:[#allocation2]] %s0
  $region1: #{tpu_custom_call.1} parent=0
    #allocation3 [shape = 'u8[8192]{0}', space=vmem, size = 0x2000, scoped, tag = 'output window, operand 0, single buffered']
    #allocation4 [shape = 's32[1]{0}', space=sflag, size = 0x4, scoped, tag = 'scoped memory for tpu_custom_call.1']
    %10 = vsyncpa [#allocation4], 0
    // Predicated region
    $region2: #{tpu_custom_call.1} parent=1 // pred_check
      _
    $region3: #{tpu_custom_call.1} parent=1 // pred_check_branch
      %12 = sbr.rel (0) target = $region5
    $region4: #{tpu_custom_call.1} parent=1 // pred_region
      _
    $region5: #{tpu_custom_call.1} parent=1 // pred_fallthru
      _
    // Predicated region
    $region6: #{tpu_custom_call.1} parent=1 // pred_check
      _
    $region7: #{tpu_custom_call.1} parent=1 // pred_check_branch
      %14 = sbr.rel (0) target = $region9
    $region8: #{tpu_custom_call.1} parent=1 // pred_region
      _
    $region9: #{tpu_custom_call.1} parent=1 // pred_fallthru
      _
    // Predicated region
    $region10: #{tpu_custom_call.1} parent=1 // pred_check
      _
    $region11: #{tpu_custom_call.1} parent=1 // pred_check_branch
      %16 = sbr.rel (0) target = $region13
    $region12: #{tpu_custom_call.1} parent=1 // pred_region
      _
    $region13: #{tpu_custom_call.1} parent=1 // pred_fallthru
      _
    // Predicated region
    $region14: #{tpu_custom_call.1} parent=1 // pred_check
      _
    $region15: #{tpu_custom_call.1} parent=1 // pred_check_branch
      %18 = sbr.rel (0) target = $region17
    $region16: #{tpu_custom_call.1} parent=1 // pred_region
      _
    $region17: #{tpu_custom_call.1} parent=1 // pred_fallthru
      _
    %s19 = sld [smem:[#allocation2]]
    %v20 = vld [vmem:[%s1] sm:$0xff]
    %v21 = vld [vmem:[%s1 + $0x8] sm:$0xff]
    %v22 = vld [vmem:[%s2] sm:$0xff]
    %v23 = vld [vmem:[%s2 + $0x8] sm:$0xff]
    %v24 = vld [vmem:[%s2 + $0x10] sm:$0xff]
    %v25 = vld [vmem:[%s2 + $0x18] sm:$0xff]
    %vm26 = vcmask 261120
    %v28 = vsel %vm26, %v20, 0
    %v31 = vsel %vm26, %v21, 0
    %33 = vmatprep.subr.mxu0 0.0
    %34 = vmatpush1.msra.mxu0 %v22
    %35 = vmatprep.subr.mxu0 0.0
    %36 = vmatpush1.msra.mxu0 %v23
    %37 = vmatprep.subr.mxu0 0.0
    %38 = vmatpush1.msra.mxu0 %v24
    %39 = vmatprep.subr.mxu0 0.0
    %40 = vmatpush1.msra.mxu0 %v25
    %41 = vmatprep.subr.mxu0 0.0
    %42 = vmatpush1.msra.mxu0 0.0
    %43 = vmatprep.subr.mxu0 0.0
    %44 = vmatpush1.msra.mxu0 0.0
    %45 = vmatprep.subr.mxu0 0.0
    %46 = vmatpush1.msra.mxu0 0.0
    %47 = vmatprep.subr.mxu0 0.0
    %48 = vmatpush1.msra.mxu0 0.0
    %49 = vmatprep.subr.mxu0 0.0
    %50 = vmatpush1.msra.mxu0 0.0
    %51 = vmatprep.subr.mxu0 0.0
    %52 = vmatpush1.msra.mxu0 0.0
    %53 = vmatprep.subr.mxu0 0.0
    %54 = vmatpush1.msra.mxu0 0.0
    %55 = vmatprep.subr.mxu0 0.0
    %56 = vmatpush1.msra.mxu0 0.0
    %57 = vmatprep.subr.mxu0 0.0
    %58 = vmatpush1.msra.mxu0 0.0
    %59 = vmatprep.subr.mxu0 0.0
    %60 = vmatpush1.msra.mxu0 0.0
    %61 = vmatprep.subr.mxu0 0.0
    %62 = vmatpush1.msra.mxu0 0.0
    %63 = vmatprep.subr.mxu0 0.0
    %64 = vmatpush1.msra.mxu0 0.0
    %65 = vmatprep.subr.mxu0 0.0
    %66 = vmatpush1.msra.mxu0 0.0
    %67 = vmatprep.subr.mxu0 0.0
    %68 = vmatpush1.msra.mxu0 0.0
    %69 = vmatprep.subr.mxu0 0.0
    %70 = vmatpush1.msra.mxu0 0.0
    %71 = vmatprep.subr.mxu0 0.0
    %72 = vmatpush1.msra.mxu0 0.0
    %73 = vmatprep.subr.mxu0 0.0
    %74 = vmatpush1.msra.mxu0 0.0
    %75 = vmatprep.subr.mxu0 0.0
    %76 = vmatpush1.msra.mxu0 0.0
    %77 = vmatprep.subr.mxu0 0.0
    %78 = vmatpush1.msra.mxu0 0.0
    %79 = vmatprep.subr.mxu0 0.0
    %80 = vmatpush1.msra.mxu0 0.0
    %81 = vmatprep.subr.mxu0 0.0
    %82 = vmatpush1.msra.mxu0 0.0
    %83 = vmatprep.subr.mxu0 0.0
    %84 = vmatpush1.msra.mxu0 0.0
    %85 = vmatprep.subr.mxu0 0.0
    %86 = vmatpush1.msra.mxu0 0.0
    %87 = vmatprep.subr.mxu0 0.0
    %88 = vmatpush1.msra.mxu0 0.0
    %89 = vmatprep.subr.mxu0 0.0
    %90 = vmatpush1.msra.mxu0 0.0
    %91 = vmatprep.subr.mxu0 0.0
    %92 = vmatpush1.msra.mxu0 0.0
    %93 = vmatprep.subr.mxu0 0.0
    %94 = vmatpush1.msra.mxu0 0.0
    %95 = vmatprep.subr.mxu0 0.0
    %96 = vmatpush1.msra.mxu0 0.0
    %97 = vmatprep.mubr.f32.mxu0 0.0
    %98 = vmatmul.mubr.f32.gmra.mrb[0].mxu0 %v28
    %v99 = vpop.f32.mrb[0].mxu0
    %v100 = vadd.f32 0.0, %v99
    %v101 = vpop.f32.mrb[0].mxu0
    %102 = vmatprep.mubr.f32.mxu0 0.0
    %103 = vmatmul.mubr.f32.gmra.mrb[0].mxu0 %v31
    %v104 = vpop.f32.mrb[0].mxu0
    %v105 = vadd.f32 0.0, %v104
    %v106 = vpop.f32.mrb[0].mxu0
    %107 = vdwg.mxu0
    %v108 = vstv %s19
    %v109 = vmul.f32 %v108, %v100
    %v110 = vmul.f32 %v108, %v105
    %v111 = vld [vmem:[%s3] sm:$0xf]
    %vm112 = vcmask 31744
    %v114 = vsel %vm112, %v109, 0
    %v117 = vsel %vm112, %v110, 0
    %vm119 = vcmask 1043456
    %v121 = vsel %vm119, %v111, 0
    %123 = vmatprep.subr.mxu0 0.0
    %124 = vmatpush1.msra.mxu0 %v121
    %125 = vmatprep.subr.mxu0 0.0
    %126 = vmatpush1.msra.mxu0 0.0
    %127 = vmatprep.subr.mxu0 0.0
    %128 = vmatpush1.msra.mxu0 0.0
    %129 = vmatprep.subr.mxu0 0.0
    %130 = vmatpush1.msra.mxu0 0.0
    %131 = vmatprep.subr.mxu0 0.0
    %132 = vmatpush1.msra.mxu0 0.0
    %133 = vmatprep.subr.mxu0 0.0
    %134 = vmatpush1.msra.mxu0 0.0
    %135 = vmatprep.subr.mxu0 0.0
    %136 = vmatpush1.msra.mxu0 0.0
    %137 = vmatprep.subr.mxu0 0.0
    %138 = vmatpush1.msra.mxu0 0.0
    %139 = vmatprep.subr.mxu0 0.0
    %140 = vmatpush1.msra.mxu0 0.0
    %141 = vmatprep.subr.mxu0 0.0
    %142 = vmatpush1.msra.mxu0 0.0
    %143 = vmatprep.subr.mxu0 0.0
    %144 = vmatpush1.msra.mxu0 0.0
    %145 = vmatprep.subr.mxu0 0.0
    %146 = vmatpush1.msra.mxu0 0.0
    %147 = vmatprep.subr.mxu0 0.0
    %148 = vmatpush1.msra.mxu0 0.0
    %149 = vmatprep.subr.mxu0 0.0
    %150 = vmatpush1.msra.mxu0 0.0
    %151 = vmatprep.subr.mxu0 0.0
    %152 = vmatpush1.msra.mxu0 0.0
    %153 = vmatprep.subr.mxu0 0.0
    %154 = vmatpush1.msra.mxu0 0.0
    %155 = vmatprep.subr.mxu0 0.0
    %156 = vmatpush1.msra.mxu0 0.0
    %157 = vmatprep.subr.mxu0 0.0
    %158 = vmatpush1.msra.mxu0 0.0
    %159 = vmatprep.subr.mxu0 0.0
    %160 = vmatpush1.msra.mxu0 0.0
    %161 = vmatprep.subr.mxu0 0.0
    %162 = vmatpush1.msra.mxu0 0.0
    %163 = vmatprep.subr.mxu0 0.0
    %164 = vmatpush1.msra.mxu0 0.0
    %165 = vmatprep.subr.mxu0 0.0
    %166 = vmatpush1.msra.mxu0 0.0
    %167 = vmatprep.subr.mxu0 0.0
    %168 = vmatpush1.msra.mxu0 0.0
    %169 = vmatprep.subr.mxu0 0.0
    %170 = vmatpush1.msra.mxu0 0.0
    %171 = vmatprep.subr.mxu0 0.0
    %172 = vmatpush1.msra.mxu0 0.0
    %173 = vmatprep.subr.mxu0 0.0
    %174 = vmatpush1.msra.mxu0 0.0
    %175 = vmatprep.subr.mxu0 0.0
    %176 = vmatpush1.msra.mxu0 0.0
    %177 = vmatprep.subr.mxu0 0.0
    %178 = vmatpush1.msra.mxu0 0.0
    %179 = vmatprep.subr.mxu0 0.0
    %180 = vmatpush1.msra.mxu0 0.0
    %181 = vmatprep.subr.mxu0 0.0
    %182 = vmatpush1.msra.mxu0 0.0
    %183 = vmatprep.subr.mxu0 0.0
    %184 = vmatpush1.msra.mxu0 0.0
    %185 = vmatprep.subr.mxu0 0.0
    %186 = vmatpush1.msra.mxu0 0.0
    %187 = vmatprep.mubr.f32.mxu0 0.0
    %188 = vmatmul.mubr.f32.gmra.mrb[0].mxu0 %v114
    %v189 = vpop.f32.mrb[0].mxu0
    %v190 = vadd.f32 0.0, %v189
    %v191 = vpop.f32.mrb[0].mxu0
    %192 = vmatprep.mubr.f32.mxu0 0.0
    %193 = vmatmul.mubr.f32.gmra.mrb[0].mxu0 %v117
    %v194 = vpop.f32.mrb[0].mxu0
    %v195 = vadd.f32 0.0, %v194
    %v196 = vpop.f32.mrb[0].mxu0
    %197 = vdwg.mxu0
    %198 = vst.msk [vmem:[#allocation3] sm:$0xff] %vm26, %v190
    %199 = vst.msk [vmem:[#allocation3 + $0x8] sm:$0xff] %vm26, %v195
    // Predicated region
    $region18: #{tpu_custom_call.1} parent=1 // pred_check
      _
    $region19: #{tpu_custom_call.1} parent=1 // pred_check_branch
      %201 = sbr.rel (0) target = $region21
    $region20: #{tpu_custom_call.1} parent=1 // pred_region
      %s203 = ssub.s32 256, 256
      %204 = vsyncadd [#allocation4], %s203
      %s205 = sshll.u32 [#allocation3], 4
      %s206 = int_to_ptr.vmem [resolvable:$true] %s205
      %211 = dma.vmem_to_hbm [thread:$0]  %s206, 256, %s4, [#allocation4], 128, 128, 8
    $region21: #{tpu_custom_call.1} parent=1 // pred_fallthru
      _
    // Predicated region
    $region22: #{tpu_custom_call.1} parent=1 // pred_check
      _
    $region23: #{tpu_custom_call.1} parent=1 // pred_check_branch
      %213 = sbr.rel (0) target = $region25
    $region24: #{tpu_custom_call.1} parent=1 // pred_region
      %214 = dma.done [#allocation4], 256
    $region25: #{tpu_custom_call.1} parent=1 // pred_fallthru
      _
    %215 = vsyncpa [#allocation4], 1

</llo_original>
